<compile_context>
chip_gen: v7x
topology: tpu7x:2x2x1
jax: 0.10.0
libtpu: 0.0.40
codegen_flags: <defaults>
</compile_context>

<pallas_src>
import math

import jax
import jax.numpy as jnp
from jax.experimental import pallas as pl
from jax.experimental.pallas import tpu as pltpu

# Deterministic "learned" parameters (torch __init__ takes phi0, phi1 scalars).
PHI0 = 1.5
PHI1 = 2.0
EPS = 1e-10


def _round_up(x, m):
    return (x + m - 1) // m * m


def _make_kernel(B, C, TB, phi0, phi1):
    # Constant contribution of the (C-1) non-target classes per row (folded at
    # trace time; Python float so it inlines as an immediate).
    const_term = float((C - 1) * phi0 * abs(math.log(phi1 * EPS)))
    needs_mask = (B % TB) != 0

    def kernel(pred_ref, tgt_ref, out_ref):
        # pred_ref: (TB, C) logits (native float dtype)
        # tgt_ref : (TB, 1) int32 class labels
        # out_ref : (1, 1, 1) f32 partial sum for this batch tile
        logits = pred_ref[...].astype(jnp.float32)                      # (TB, C)

        # softmax pieces (only the denominator + target numerator are needed)
        m = jnp.max(logits, axis=1, keepdims=True)                      # (TB, 1)
        e = jnp.exp(logits - m)                                         # (TB, C)
        sum_e = jnp.sum(e, axis=1, keepdims=True)                       # (TB, 1)

        # target-class numerator via iota compare (one-hot never materialized
        # as a per-class loss term)
        cls = jax.lax.broadcasted_iota(jnp.int32, (TB, C), 1)
        e_t = jnp.sum(jnp.where(cls == tgt_ref[...], e, 0.0),
                      axis=1, keepdims=True)                            # (TB, 1)
        p_t = e_t * pl.reciprocal(sum_e)   # exact recip (approx=True would risk rtol)

        # one log per row; keep the +1e-10 guard (reference parity)
        per_sample = phi0 * jnp.abs(jnp.log(phi1 * (p_t + EPS))) + const_term  # (TB,1)

        if needs_mask:  # last tile may extend past B
            row = pl.program_id(0) * TB + jax.lax.broadcasted_iota(
                jnp.int32, (TB, 1), 0)
            per_sample = jnp.where(row < B, per_sample, 0.0)

        out_ref[...] = jnp.full((1, 1, 1), jnp.sum(per_sample), dtype=jnp.float32)

    return kernel


def learned_loss(y_pred, y_target, phi0=PHI0, phi1=PHI1):
    """y_pred: [B, C] float logits (f32/bf16), y_target: [B] int labels -> scalar mean loss."""
    B, C = y_pred.shape
    tgt2d = y_target.astype(jnp.int32).reshape(B, 1)

    # Batch tile: multiple of 8, capped so double-buffered logits tiles stay
    # well inside the smallest scoped-VMEM default (v5e: 16 MiB).
    itemsize = jnp.dtype(y_pred.dtype).itemsize
    vmem_budget = 8 * 1024 * 1024
    tb_cap = max(8, (vmem_budget // (2 * C * itemsize)) // 8 * 8)
    TB = min(_round_up(B, 8), 1024, tb_cap)
    num_tiles = pl.cdiv(B, TB)

    partials = pl.pallas_call(
        _make_kernel(B, C, TB, float(phi0), float(phi1)),
        out_shape=jax.ShapeDtypeStruct((num_tiles, 1, 1), jnp.float32),
        grid=(num_tiles,),
        in_specs=[
            pl.BlockSpec((TB, C), lambda i: (i, 0)),   # logits, native dtype
            pl.BlockSpec((TB, 1), lambda i: (i, 0)),   # int32 targets
        ],
        # per-tile partial sums; leading grid dim carries the tile index so the
        # last-two block dims equal the full array dims (tiling-constraint safe)
        out_specs=pl.BlockSpec((1, 1, 1), lambda i: (i, 0, 0)),
        compiler_params=pltpu.CompilerParams(
            dimension_semantics=("parallel",),          # v7x: both TCs share the batch
            vmem_limit_bytes=32 * 1024 * 1024,
        ),
    )(y_pred, tgt2d)

    # reduction='mean' over the (B, 1) per-sample losses.
    return jnp.sum(partials) / jnp.float32(B)


def _reference(y_pred, y_target, phi0=PHI0, phi1=PHI1):
    # Pure-JAX reference mirroring the torch module (logits_to_prob, one_hot, mean).
    p = jax.nn.softmax(y_pred.astype(jnp.float32), axis=1)
    t = jax.nn.one_hot(y_target, y_pred.shape[1], dtype=jnp.float32)
    loss = jnp.sum(phi0 * jnp.abs(jnp.log(phi1 * (p * t + EPS))), axis=1, keepdims=True)
    return jnp.mean(loss)


if __name__ == "__main__":
    B, C = 8, 16  # output_dim = C = 16
    key = jax.random.PRNGKey(0)
    k1, k2 = jax.random.split(key)
    y_pred = jax.random.normal(k1, (B, C), dtype=jnp.float32)
    y_target = jax.random.randint(k2, (B,), 0, C, dtype=jnp.int32)

    loss = learned_loss(y_pred, y_target)
    jax.block_until_ready(loss)

    ref = _reference(y_pred, y_target)
    assert jnp.allclose(loss, ref, rtol=1e-4, atol=1e-5), (loss, ref)
    print("KERNEL_OK")
</pallas_src>

<mosaic_0001>
module attributes {stable_mosaic.version = 11 : i64} {
  func.func @kernel(%arg0: i32, %arg1: memref<8x16xf32, #tpu.memory_space<vmem>>, %arg2: memref<8x1xi32, #tpu.memory_space<vmem>>, %arg3: memref<1x1x1xf32, #tpu.memory_space<vmem>>) attributes {dimension_semantics = [#tpu.dimension_semantics<parallel>], iteration_bounds = array<i64: 1>, scalar_prefetch = 0 : i64, scratch_operands = 0 : i64, tpu.core_type = #tpu.core_type<tc>, window_params = [{transform_indices = @transform_0, window_bounds = array<i64: 8, 16>}, {transform_indices = @transform_1, window_bounds = array<i64: 8, 1>}, {transform_indices = @transform_2, window_bounds = array<i64: 1, 1, 1>}]} {
    %c0 = arith.constant 0 : index
    %c0_0 = arith.constant 0 : index
    %0 = vector.load %arg1[%c0, %c0_0] : memref<8x16xf32, #tpu.memory_space<vmem>>, vector<8x16xf32>
    %cst = arith.constant dense<0xFF800000> : vector<8xf32>
    %1 = vector.multi_reduction <maximumf>, %0, %cst [1] : vector<8x16xf32> to vector<8xf32>
    %2 = vector.shape_cast %1 : vector<8xf32> to vector<8x1xf32>
    %3 = vector.broadcast %2 : vector<8x1xf32> to vector<8x16xf32>
    %4 = arith.subf %0, %3 : vector<8x16xf32>
    %5 = math.exp %4 : vector<8x16xf32>
    %cst_1 = arith.constant dense<0.000000e+00> : vector<8xf32>
    %6 = vector.multi_reduction <add>, %5, %cst_1 [1] : vector<8x16xf32> to vector<8xf32>
    %7 = vector.shape_cast %6 : vector<8xf32> to vector<8x1xf32>
    %8 = tpu.iota {dimensions = array<i32: 1>} : vector<8x16xi32>
    %c0_2 = arith.constant 0 : index
    %c0_3 = arith.constant 0 : index
    %9 = vector.load %arg2[%c0_2, %c0_3] : memref<8x1xi32, #tpu.memory_space<vmem>>, vector<8x1xi32>
    %10 = vector.broadcast %9 : vector<8x1xi32> to vector<8x16xi32>
    %11 = arith.cmpi eq, %8, %10 : vector<8x16xi32>
    %cst_4 = arith.constant 0.000000e+00 : f32
    %12 = vector.broadcast %cst_4 : f32 to vector<8x16xf32>
    %13 = arith.select %11, %5, %12 : vector<8x16xi1>, vector<8x16xf32>
    %cst_5 = arith.constant dense<0.000000e+00> : vector<8xf32>
    %14 = vector.multi_reduction <add>, %13, %cst_5 [1] : vector<8x16xf32> to vector<8xf32>
    %15 = vector.shape_cast %14 : vector<8xf32> to vector<8x1xf32>
    %16 = tpu.reciprocal %7 : vector<8x1xf32> -> vector<8x1xf32>
    %17 = arith.mulf %15, %16 : vector<8x1xf32>
    %cst_6 = arith.constant 1.000000e-10 : f32
    %18 = vector.broadcast %cst_6 : f32 to vector<8x1xf32>
    %19 = arith.addf %17, %18 : vector<8x1xf32>
    %cst_7 = arith.constant 2.000000e+00 : f32
    %20 = vector.broadcast %cst_7 : f32 to vector<8x1xf32>
    %21 = arith.mulf %20, %19 : vector<8x1xf32>
    %22 = math.log %21 : vector<8x1xf32>
    %23 = math.absf %22 : vector<8x1xf32>
    %cst_8 = arith.constant 1.500000e+00 : f32
    %24 = vector.broadcast %cst_8 : f32 to vector<8x1xf32>
    %25 = arith.mulf %24, %23 : vector<8x1xf32>
    %cst_9 = arith.constant 502.48584 : f32
    %26 = vector.broadcast %cst_9 : f32 to vector<8x1xf32>
    %27 = arith.addf %25, %26 : vector<8x1xf32>
    %28 = vector.shape_cast %27 : vector<8x1xf32> to vector<1x8x1xf32>
    %cst_10 = arith.constant dense<0.000000e+00> : vector<1xf32>
    %29 = vector.multi_reduction <add>, %28, %cst_10 [1, 2] : vector<1x8x1xf32> to vector<1xf32>
    %30 = vector.shape_cast %29 : vector<1xf32> to vector<1x1x1xf32>
    %31 = vector.extract %30[0, 0, 0] : f32 from vector<1x1x1xf32>
    %32 = vector.broadcast %31 : f32 to vector<1x1x1xf32>
    %c0_11 = arith.constant 0 : index
    %c0_12 = arith.constant 0 : index
    %c0_13 = arith.constant 0 : index
    %33 = vector.load %arg3[%c0_11, %c0_12, %c0_13] : memref<1x1x1xf32, #tpu.memory_space<vmem>>, vector<1x1x1xf32>
    tpu.vector_store %arg3[%c0_11, %c0_12, %c0_13], %32 {strides = array<i32>} : memref<1x1x1xf32, #tpu.memory_space<vmem>>, vector<1x1x1xf32>,
    return
  }
  func.func @transform_0(%arg0: i32) -> (i32, i32) {
    %c0_i32 = arith.constant 0 : i32
    %c0_i32_0 = arith.constant 0 : i32
    return %arg0, %c0_i32 : i32, i32
  }
  func.func @transform_1(%arg0: i32) -> (i32, i32) {
    %c0_i32 = arith.constant 0 : i32
    %c0_i32_0 = arith.constant 0 : i32
    return %arg0, %c0_i32 : i32, i32
  }
  func.func @transform_2(%arg0: i32) -> (i32, i32, i32) {
    %c0_i32 = arith.constant 0 : i32
    %c0_i32_0 = arith.constant 0 : i32
    %c0_i32_1 = arith.constant 0 : i32
    return %arg0, %c0_i32, %c0_i32_0 : i32, i32, i32
  }
}

</mosaic_0001>

<llo_original>
// kernel: tpu_custom_call.1
$region0: #{tpu_custom_call.1}
  #allocation0 [shape = 'u32[]', space=smem, size = 0x4, offset = 0x4, fixed_abs, tag = 'smem constant byte address 0x4 - core index']
  #allocation1 [shape = 'u32[144,128]{1,0:T(1,128)}', space=vmem, size = 0x12000, scoped, tag = 'internal scratch']
  %s0 = inlined_call_operand.vmem [shape: f32[8,16], index: 0, kind: input, shape index: {}]
  %s1 = inlined_call_operand.vmem [shape: s32[8,1], index: 1, kind: input, shape index: {}]
  %s2 = inlined_call_operand.hbm [shape: f32[1,1,1], index: 2, kind: output, shape index: {}]
  %s3 = sld [smem:[#allocation0]]
  $region18: #{tpu_custom_call.1} parent=0
    _
  %s5 = ssub.s32 1, %s3
  %s6 = scalar_select 0, %s5, %s3
  $region1: #{tpu_custom_call.1} parent=0
    #allocation2 [shape = 'u8[512]{0}', space=vmem, size = 0x400, scoped, tag = 'output window, operand 0, single buffered']
    #allocation3 [shape = 's32[1]{0}', space=sflag, size = 0x4, scoped, tag = 'scoped memory for tpu_custom_call.1']
    %7 = vsyncpa [#allocation3], 0
    // Predicated region
    $region2: #{tpu_custom_call.1} parent=1 // pred_check
      _
    $region3: #{tpu_custom_call.1} parent=1 // pred_check_branch
      %9 = sbr.rel (0) target = $region5
    $region4: #{tpu_custom_call.1} parent=1 // pred_region
      _
    $region5: #{tpu_custom_call.1} parent=1 // pred_fallthru
      _
    // Predicated region
    $region6: #{tpu_custom_call.1} parent=1 // pred_check
      _
    $region7: #{tpu_custom_call.1} parent=1 // pred_check_branch
      %11 = sbr.rel (0) target = $region9
    $region8: #{tpu_custom_call.1} parent=1 // pred_region
      _
    $region9: #{tpu_custom_call.1} parent=1 // pred_fallthru
      _
    %v12 = vld [vmem:[%s0] sm:$0xff]
    %vm13 = vcmask 130048
    %v14 = vsel %vm13, %v12, -inf
    %15 = vmax.xlane.f32.xlu0 %v14
    %v16 = vpop.xlane.xlu0 %15
    %v17 = vsub.f32 %v12, %v16
    %v18 = vmul.f32 %v17, 1.442695
    %v19 = vpow.pop %v18
    %v20 = vsel %vm13, %v19, 0.0
    %21 = vadd.xlane.f32.xlu0 %v20
    %v22 = vpop.xlane.xlu0 %21
    %v23 = vlaneseq
    %v24 = vand.u32 %v23, 127
    %v25 = vld [vmem:[%s1] sm:$0xff]
    %26 = vset.pattern.permute.xlu0 0
    %27 = vperm.xlu0 %26, %v25
    %v28 = vpop.permute.xlu0 %27
    %vm29 = vcmp.eq.s32.totalorder %v24, %v28
    %v30 = vsel %vm29, %v19, 0.0
    %v31 = vsel %vm13, %v30, 0.0
    %32 = vadd.xlane.f32.xlu0 %v31
    %v33 = vpop.xlane.xlu0 %32
    %v34 = vrcp.pop %v22
    %v35 = vmul.f32 %v33, %v34
    %v36 = vadd.f32 %v35, 1e-10
    %v37 = vmul.f32 %v36, 2.0
    %v38 = vlog2.pop %v37
    %v39 = vmul.f32 %v38, 0.6931472
    %v40 = vand.u32 2147483647, %v39
    %v41 = vmul.f32 %v40, 1.5
    %v42 = vadd.f32 %v41, 502.48584
    %vm43 = vcmask 7168
    %v44 = vsel %vm43, %v42, 0.0
    %45 = vadd.xlane.f32.xlu0 %v44
    %v46 = vpop.xlane.xlu0 %45
    %v47 = vrot.slane %v46, 4
    %v48 = vadd.f32 %v46, %v47
    %v49 = vrot.slane %v48, 2
    %v50 = vadd.f32 %v48, %v49
    %v51 = vrot.slane %v50, 1
    %v52 = vadd.f32 %v50, %v51
    %s53 = vtos %v52
    %v54 = vstv %s53
    %vm55 = vcmask 0
    %56 = vst.msk [vmem:[#allocation2] sm:$0x1] %vm55, %v54
    // Predicated region
    $region10: #{tpu_custom_call.1} parent=1 // pred_check
      _
    $region11: #{tpu_custom_call.1} parent=1 // pred_check_branch
      %58 = sbr.rel (0) target = $region13
    $region12: #{tpu_custom_call.1} parent=1 // pred_region
      %s60 = ssub.s32 16, 16
      %61 = vsyncadd [#allocation3], %s60
      %s63 = sshll.u32 [#allocation2], 4
      %s64 = int_to_ptr.vmem [resolvable:$true] %s63
      %66 = dma.vmem_to_hbm [thread:$0]  %s64, 16, %s2, [#allocation3]
    $region13: #{tpu_custom_call.1} parent=1 // pred_fallthru
      _
    // Predicated region
    $region14: #{tpu_custom_call.1} parent=1 // pred_check
      _
    $region15: #{tpu_custom_call.1} parent=1 // pred_check_branch
      %68 = sbr.rel (0) target = $region17
    $region16: #{tpu_custom_call.1} parent=1 // pred_region
      %69 = dma.done [#allocation3], 16
    $region17: #{tpu_custom_call.1} parent=1 // pred_fallthru
      _
    %70 = vsyncpa [#allocation3], 1

</llo_original>
